<compile_context>
chip_gen: v6e
topology: v6e:2x2x1
jax: 0.10.0
libtpu: 0.0.40
codegen_flags: <defaults>
</compile_context>

<pallas_src>
import jax
import jax.numpy as jnp
from jax.experimental import pallas as pl
from jax.experimental.pallas import tpu as pltpu


# ------------------------------------------------------------------
# Model config (NeuralNetFunc(obs_dim, hidden_layer_neurons, activations)
# with Tanh activations, the standard neural-ODE choice)
# ------------------------------------------------------------------
OBS_DIM = 8
HIDDEN = [32, 32]          # hidden_layer_neurons
LANES = 128                # vreg lane width


def _round_up(x: int, m: int) -> int:
    return ((x + m - 1) // m) * m


# ------------------------------------------------------------------
# Kernel
# ------------------------------------------------------------------
def _make_mlp_kernel(chunk: int):
    """Fused MLP forward over one (tb, obs_dim) batch-major tile.

    The tile is processed in `chunk`-row sub-tiles; each sub-tile is transposed
    to feature-major (features on sublanes, batch on the 128-lane axis) so the
    MXU / VPU / EUP all work on lane-dense (32, chunk) tiles, and hidden
    activations never leave the vector registers.
    """

    def mlp_kernel(x_ref, w1_ref, b1_ref, w2_ref, b2_ref, w3_ref, b3_ref, o_ref):
        # Weights / biases are tiny and VMEM-resident; load once per grid step.
        w1 = w1_ref[...]; b1 = b1_ref[...]
        w2 = w2_ref[...]; b2 = b2_ref[...]
        w3 = w3_ref[...]; b3 = b3_ref[...]
        tb = x_ref.shape[0]                      # static; tb % chunk == 0

        @pl.loop(0, tb // chunk)
        def _(c):
            i = pl.multiple_of(c * chunk, chunk)
            xb = x_ref[pl.ds(i, chunk), :]       # (chunk, obs)  batch-major
            x = xb.T                             # (obs, chunk)  feature-major (XLU)
            h = jnp.dot(w1, x, preferred_element_type=jnp.float32) + b1
            h = jnp.tanh(h)                      # activation 0 (EUP, lane-dense)
            h = jnp.dot(w2, h, preferred_element_type=jnp.float32) + b2
            h = jnp.tanh(h)                      # activation 1
            o = jnp.dot(w3, h, preferred_element_type=jnp.float32) + b3
            o_ref[pl.ds(i, chunk), :] = o.T.astype(o_ref.dtype)   # back to batch-major

    return mlp_kernel


# ------------------------------------------------------------------
# Tile selection
# ------------------------------------------------------------------
def _pick_tiles(n: int, batch_tile: int):
    """Returns (tb, chunk): grid batch tile and in-kernel sub-tile width."""
    req = max(LANES, _round_up(batch_tile, LANES))
    steps = pl.cdiv(n, req)
    if n > LANES:
        steps = max(steps, 2)        # >=2 grid steps so both v7x TCs get work
    tb = _round_up(pl.cdiv(n, steps), LANES)   # balanced tiles, no near-empty tail
    if tb >= 512:
        tb = _round_up(tb, 512)      # nicer sub-tiling for large tiles
    tb = min(tb, 16384)              # VMEM guard: double-buffered I/O <= 16 MiB
    for cb in (512, 384, 256, 128):  # largest sub-tile that divides tb
        if tb % cb == 0:
            return tb, cb
    return tb, tb                    # unreachable (tb is a multiple of 128)


# ------------------------------------------------------------------
# Forward
# ------------------------------------------------------------------
def _xla_forward(y, params):
    """Fused XLA path for small batches (PyTorch Linear semantics: x @ W.T + b)."""
    batch, one, obs_dim = y.shape
    h = y.reshape(batch * one, obs_dim).astype(jnp.float32)
    (w1, b1), (w2, b2), (w3, b3) = params
    h = jnp.tanh(h @ w1.T + b1.T)
    h = jnp.tanh(h @ w2.T + b2.T)
    h = h @ w3.T + b3.T
    return h.reshape(batch, one, obs_dim)


def neural_net_func_forward(t, y, params, *, batch_tile: int = 8192,
                            min_pallas_batch: int = 1024, force_pallas: bool = False):
    """Pallas-backed equivalent of NeuralNetFunc.forward(t, y).

    t is ignored (as in the reference module).  y: (batch, 1, obs_dim).
    Returns (batch, 1, obs_dim) -- nn.Linear preserves leading dims.
    """
    del t
    batch, one, obs_dim = y.shape
    n = batch * one

    if n < min_pallas_batch and not force_pallas:
        # Kernel launch + single-step grid is pure overhead at this scale.
        return _xla_forward(y, params)

    (w1, b1), (w2, b2), (w3, b3) = params
    h1 = w1.shape[0]
    h2 = w2.shape[0]

    # Batch-major slab, no transpose / no pad copy in HBM.
    x = y.reshape(n, obs_dim)
    if x.dtype != jnp.float32:
        x = x.astype(jnp.float32)

    tb, cb = _pick_tiles(n, batch_tile)
    grid = (pl.cdiv(n, tb),)

    # VMEM budget: a (tb, obs) f32 block is lane-padded to 128 lanes in VMEM
    # (~tb*512 bytes); input + output, double-buffered, plus headroom.
    io_block_bytes = (tb // 8) * 8 * 128 * 4
    vmem_limit = min(max(32 << 20, 4 * io_block_bytes + (4 << 20)), 64 << 20)

    def const_spec(shape):
        # Same block every grid step -> DMA'd once, VMEM-resident.
        # TODO(synk): pipeline_mode=pl.Buffered(1) would drop the (tiny) second
        # buffer of these constant operands; omitted to keep lowering simple.
        return pl.BlockSpec(shape, lambda i: (0, 0))

    out = pl.pallas_call(
        _make_mlp_kernel(cb),
        out_shape=jax.ShapeDtypeStruct((n, obs_dim), jnp.float32),
        grid=grid,
        in_specs=[
            pl.BlockSpec((tb, obs_dim), lambda i: (i, 0)),   # x tile (pipelined)
            const_spec((h1, obs_dim)),                       # W1 (out, in)
            const_spec((h1, 1)),                             # b1
            const_spec((h2, h1)),                            # W2
            const_spec((h2, 1)),                             # b2
            const_spec((obs_dim, h2)),                       # W3
            const_spec((obs_dim, 1)),                        # b3
        ],
        out_specs=pl.BlockSpec((tb, obs_dim), lambda i: (i, 0)),
        compiler_params=pltpu.CompilerParams(
            dimension_semantics=("parallel",),               # megacore split on v7x
            vmem_limit_bytes=vmem_limit,
        ),
    )(x, w1, b1, w2, b2, w3, b3)

    return out.reshape(batch, one, obs_dim)


# ------------------------------------------------------------------
# Parameter init + pure-JAX reference
# ------------------------------------------------------------------
def init_params(key, obs_dim, hidden):
    """Matches _initialize_parameters: weights ~ N(0, 0.1), biases = 0.

    Weights kept in PyTorch-native (out_features, in_features) layout;
    biases stored as (out_features, 1) for feature-major broadcasting.
    """
    dims = [obs_dim] + list(hidden) + [obs_dim]
    params = []
    for i in range(len(dims) - 1):
        key, sub = jax.random.split(key)
        w = 0.1 * jax.random.normal(sub, (dims[i + 1], dims[i]), dtype=jnp.float32)
        b = jnp.zeros((dims[i + 1], 1), dtype=jnp.float32)
        params.append((w, b))
    return params


def reference_forward(y, params):
    """Pure-JAX reference (PyTorch Linear semantics: y @ W.T + b)."""
    batch, one, obs_dim = y.shape
    h = y.reshape(batch * one, obs_dim).astype(jnp.float32)
    for idx, (w, b) in enumerate(params):
        h = h @ w.T + b.T
        if idx < len(params) - 1:
            h = jnp.tanh(h)
    return h.reshape(batch, one, obs_dim)


# ------------------------------------------------------------------
# Demo / correctness checks
# ------------------------------------------------------------------
if __name__ == "__main__":
    key = jax.random.PRNGKey(0)
    k1, k2, k3, kp = jax.random.split(key, 4)

    params = init_params(kp, OBS_DIM, HIDDEN)
    t = jnp.linspace(0.0, 1.0, 8)   # unused by forward, as in the reference module

    # (1) Module-sized shape (batch=2, 1, obs_dim=8): small-batch XLA fallback.
    y_small = jax.random.normal(k1, (2, 1, OBS_DIM), dtype=jnp.float32)
    out_small = jax.block_until_ready(neural_net_func_forward(t, y_small, params))
    assert out_small.shape == (2, 1, OBS_DIM)
    assert jnp.allclose(out_small, reference_forward(y_small, params),
                        atol=1e-5, rtol=1e-5)

    # (2) Force the Pallas path at a small, non-divisible batch: exercises a
    #     multi-step grid and a trailing partial block with no host-side pad.
    y_med = jax.random.normal(k2, (300, 1, OBS_DIM), dtype=jnp.float32)
    out_med = jax.block_until_ready(
        neural_net_func_forward(t, y_med, params, batch_tile=128, force_pallas=True))
    assert out_med.shape == (300, 1, OBS_DIM)
    assert jnp.allclose(out_med, reference_forward(y_med, params),
                        atol=1e-5, rtol=1e-5)

    # (3) Default Pallas path: multi-step grid, 512-lane sub-tiling, partial tail.
    y_big = jax.random.normal(k3, (4096 + 64, 1, OBS_DIM), dtype=jnp.float32)
    out_big = jax.block_until_ready(neural_net_func_forward(t, y_big, params))
    assert out_big.shape == (4096 + 64, 1, OBS_DIM)
    assert jnp.allclose(out_big, reference_forward(y_big, params),
                        atol=1e-5, rtol=1e-5)

    print("KERNEL_OK")
</pallas_src>

<mosaic_0001>
module attributes {stable_mosaic.version = 11 : i64} {
  func.func @mlp_kernel(%arg0: i32, %arg1: memref<128x8xf32, #tpu.memory_space<vmem>>, %arg2: memref<32x8xf32, #tpu.memory_space<vmem>>, %arg3: memref<32x1xf32, #tpu.memory_space<vmem>>, %arg4: memref<32x32xf32, #tpu.memory_space<vmem>>, %arg5: memref<32x1xf32, #tpu.memory_space<vmem>>, %arg6: memref<8x32xf32, #tpu.memory_space<vmem>>, %arg7: memref<8x1xf32, #tpu.memory_space<vmem>>, %arg8: memref<128x8xf32, #tpu.memory_space<vmem>>) attributes {dimension_semantics = [#tpu.dimension_semantics<parallel>], iteration_bounds = array<i64: 3>, scalar_prefetch = 0 : i64, scratch_operands = 0 : i64, tpu.core_type = #tpu.core_type<tc>, window_params = [{transform_indices = @transform_0, window_bounds = array<i64: 128, 8>}, {pipeline_mode = #tpu.pipeline_mode<synchronous>, transform_indices = @transform_1, window_bounds = array<i64: 32, 8>}, {pipeline_mode = #tpu.pipeline_mode<synchronous>, transform_indices = @transform_2, window_bounds = array<i64: 32, 1>}, {pipeline_mode = #tpu.pipeline_mode<synchronous>, transform_indices = @transform_3, window_bounds = array<i64: 32, 32>}, {pipeline_mode = #tpu.pipeline_mode<synchronous>, transform_indices = @transform_4, window_bounds = array<i64: 32, 1>}, {pipeline_mode = #tpu.pipeline_mode<synchronous>, transform_indices = @transform_5, window_bounds = array<i64: 8, 32>}, {pipeline_mode = #tpu.pipeline_mode<synchronous>, transform_indices = @transform_6, window_bounds = array<i64: 8, 1>}, {transform_indices = @transform_7, window_bounds = array<i64: 128, 8>}]} {
    %c0 = arith.constant 0 : index
    %c0_0 = arith.constant 0 : index
    %0 = vector.load %arg2[%c0, %c0_0] : memref<32x8xf32, #tpu.memory_space<vmem>>, vector<32x8xf32>
    %c0_1 = arith.constant 0 : index
    %c0_2 = arith.constant 0 : index
    %1 = vector.load %arg3[%c0_1, %c0_2] : memref<32x1xf32, #tpu.memory_space<vmem>>, vector<32x1xf32>
    %c0_3 = arith.constant 0 : index
    %c0_4 = arith.constant 0 : index
    %2 = vector.load %arg4[%c0_3, %c0_4] : memref<32x32xf32, #tpu.memory_space<vmem>>, vector<32x32xf32>
    %c0_5 = arith.constant 0 : index
    %c0_6 = arith.constant 0 : index
    %3 = vector.load %arg5[%c0_5, %c0_6] : memref<32x1xf32, #tpu.memory_space<vmem>>, vector<32x1xf32>
    %c0_7 = arith.constant 0 : index
    %c0_8 = arith.constant 0 : index
    %4 = vector.load %arg6[%c0_7, %c0_8] : memref<8x32xf32, #tpu.memory_space<vmem>>, vector<8x32xf32>
    %c0_9 = arith.constant 0 : index
    %c0_10 = arith.constant 0 : index
    %5 = vector.load %arg7[%c0_9, %c0_10] : memref<8x1xf32, #tpu.memory_space<vmem>>, vector<8x1xf32>
    %c0_i32 = arith.constant 0 : i32
    %c1_i32 = arith.constant 1 : i32
    %6 = arith.muli %c0_i32, %c1_i32 : i32
    %c0_i32_11 = arith.constant 0 : i32
    %7 = arith.addi %c0_i32_11, %6 : i32
    %c128_i32 = arith.constant 128 : i32
    %8 = arith.muli %7, %c128_i32 : i32
    %9 = tpu.assume_multiple %8, 128 : i32
    %10 = arith.index_cast %9 : i32 to index
    %c0_12 = arith.constant 0 : index
    %11 = vector.load %arg1[%10, %c0_12] : memref<128x8xf32, #tpu.memory_space<vmem>>, vector<128x8xf32>
    %12 = tpu.transpose %11, [1, 0] : vector<128x8xf32> -> vector<8x128xf32>
    %cst = arith.constant dense<0.000000e+00> : vector<32x128xf32>
    %13 = tpu.matmul %0, %12, %cst {dimension_numbers = #tpu.dot_dimension_numbers<[1], [0], [0], [1], [0, 0, 1, 1], [], []>} : vector<32x8xf32>, vector<8x128xf32>, vector<32x128xf32> -> vector<32x128xf32>
    %14 = vector.broadcast %1 : vector<32x1xf32> to vector<32x128xf32>
    %15 = arith.addf %13, %14 : vector<32x128xf32>
    %16 = math.tanh %15 : vector<32x128xf32>
    %cst_13 = arith.constant dense<0.000000e+00> : vector<32x128xf32>
    %17 = tpu.matmul %2, %16, %cst_13 {dimension_numbers = #tpu.dot_dimension_numbers<[1], [0], [0], [1], [0, 0, 1, 1], [], []>} : vector<32x32xf32>, vector<32x128xf32>, vector<32x128xf32> -> vector<32x128xf32>
    %18 = vector.broadcast %3 : vector<32x1xf32> to vector<32x128xf32>
    %19 = arith.addf %17, %18 : vector<32x128xf32>
    %20 = math.tanh %19 : vector<32x128xf32>
    %cst_14 = arith.constant dense<0.000000e+00> : vector<8x128xf32>
    %21 = tpu.matmul %4, %20, %cst_14 {dimension_numbers = #tpu.dot_dimension_numbers<[1], [0], [0], [1], [0, 0, 1, 1], [], []>} : vector<8x32xf32>, vector<32x128xf32>, vector<8x128xf32> -> vector<8x128xf32>
    %22 = vector.broadcast %5 : vector<8x1xf32> to vector<8x128xf32>
    %23 = arith.addf %21, %22 : vector<8x128xf32>
    %24 = tpu.transpose %23, [1, 0] : vector<8x128xf32> -> vector<128x8xf32>
    %25 = arith.index_cast %9 : i32 to index
    %c0_15 = arith.constant 0 : index
    %26 = vector.load %arg8[%25, %c0_15] : memref<128x8xf32, #tpu.memory_space<vmem>>, vector<128x8xf32>
    tpu.vector_store %arg8[%25, %c0_15], %24 {strides = array<i32>} : memref<128x8xf32, #tpu.memory_space<vmem>>, vector<128x8xf32>,
    %c1_i32_16 = arith.constant 1 : i32
    return
  }
  func.func @transform_0(%arg0: i32) -> (i32, i32) {
    %c0_i32 = arith.constant 0 : i32
    %c0_i32_0 = arith.constant 0 : i32
    return %arg0, %c0_i32 : i32, i32
  }
  func.func @transform_1(%arg0: i32) -> (i32, i32) {
    %c0_i32 = arith.constant 0 : i32
    %c0_i32_0 = arith.constant 0 : i32
    %c0_i32_1 = arith.constant 0 : i32
    return %c0_i32, %c0_i32_0 : i32, i32
  }
  func.func @transform_2(%arg0: i32) -> (i32, i32) {
    %c0_i32 = arith.constant 0 : i32
    %c0_i32_0 = arith.constant 0 : i32
    %c0_i32_1 = arith.constant 0 : i32
    return %c0_i32, %c0_i32_0 : i32, i32
  }
  func.func @transform_3(%arg0: i32) -> (i32, i32) {
    %c0_i32 = arith.constant 0 : i32
    %c0_i32_0 = arith.constant 0 : i32
    %c0_i32_1 = arith.constant 0 : i32
    return %c0_i32, %c0_i32_0 : i32, i32
  }
  func.func @transform_4(%arg0: i32) -> (i32, i32) {
    %c0_i32 = arith.constant 0 : i32
    %c0_i32_0 = arith.constant 0 : i32
    %c0_i32_1 = arith.constant 0 : i32
    return %c0_i32, %c0_i32_0 : i32, i32
  }
  func.func @transform_5(%arg0: i32) -> (i32, i32) {
    %c0_i32 = arith.constant 0 : i32
    %c0_i32_0 = arith.constant 0 : i32
    %c0_i32_1 = arith.constant 0 : i32
    return %c0_i32, %c0_i32_0 : i32, i32
  }
  func.func @transform_6(%arg0: i32) -> (i32, i32) {
    %c0_i32 = arith.constant 0 : i32
    %c0_i32_0 = arith.constant 0 : i32
    %c0_i32_1 = arith.constant 0 : i32
    return %c0_i32, %c0_i32_0 : i32, i32
  }
  func.func @transform_7(%arg0: i32) -> (i32, i32) {
    %c0_i32 = arith.constant 0 : i32
    %c0_i32_0 = arith.constant 0 : i32
    return %arg0, %c0_i32 : i32, i32
  }
}

</mosaic_0001>

<llo_original>
// kernel: tpu_custom_call.1
$region0: #{tpu_custom_call.1}
  #allocation0 [shape = 'u32[]', space=smem, size = 0x4, offset = 0x4, fixed_abs, tag = 'smem constant byte address 0x4 - core index']
  #allocation1 [shape = 'u32[144,128]{1,0:T(1,128)}', space=vmem, size = 0x12000, scoped, tag = 'internal scratch']
  %s0 = inlined_call_operand.vmem [shape: f32[300,8], index: 0, kind: input, shape index: {}]
  %s1 = inlined_call_operand.vmem [shape: f32[32,8], index: 1, kind: input, shape index: {}]
  %s2 = inlined_call_operand.vmem [shape: f32[32,1], index: 2, kind: input, shape index: {}]
  %s3 = inlined_call_operand.vmem [shape: f32[32,32], index: 3, kind: input, shape index: {}]
  %s4 = inlined_call_operand.vmem [shape: f32[32,1], index: 4, kind: input, shape index: {}]
  %s5 = inlined_call_operand.vmem [shape: f32[8,32], index: 5, kind: input, shape index: {}]
  %s6 = inlined_call_operand.vmem [shape: f32[8,1], index: 6, kind: input, shape index: {}]
  %s7 = inlined_call_operand.vmem [shape: f32[300,8], index: 7, kind: output, shape index: {}]
  %s8 = sld [smem:[#allocation0]]
  $region109: #{tpu_custom_call.1} parent=0
    _
  %s10 = ssub.s32 1, %s8
  %s11 = scalar_select 0, %s10, %s8
  $region1: #{tpu_custom_call.1} parent=0
    #allocation2 [shape = 'u8[131072]{0}', space=vmem, size = 0x20000, scoped, tag = 'output window, operand 0']
    loop: start=0, step=1, limit=5
    $region2: #{tpu_custom_call.1} parent=1 // loop_pre_header
      _
    $region3: #{tpu_custom_call.1} parent=1 // loop_header
      %s13 = sphi 0, %s17
      %p14 = scmp.ge.s32.totalorder %s13, 5
      %s23 = sphi 0, %s25
      %s26 = sphi 0, %s23
      %s27 = sphi 0, %s26
      %s43 = sphi 0, %s27
      %s47 = sphi 0, %s47
      %s49 = sphi 0, %s47
      %s50 = sphi 0, %s49
      %s64 = sphi 0, %s50
      %s68 = sphi 0, %s68
      %s70 = sphi 0, %s68
      %s71 = sphi 0, %s70
      %s85 = sphi 0, %s71
      %s89 = sphi 0, %s89
      %s91 = sphi 0, %s89
      %s92 = sphi 0, %s91
      %s106 = sphi 0, %s92
      %s110 = sphi 0, %s110
      %s112 = sphi 0, %s110
      %s113 = sphi 0, %s112
      %s127 = sphi 0, %s113
      %s131 = sphi 0, %s131
      %s133 = sphi 0, %s131
      %s134 = sphi 0, %s133
      %s148 = sphi 0, %s134
      %s152 = sphi 0, %s152
      %s154 = sphi 0, %s152
      %s155 = sphi 0, %s154
      %s169 = sphi 0, %s155
      %s175 = sphi 0, %s177
      %s178 = sphi 0, %s175
      %s179 = sphi 0, %s178
      %s195 = sphi 0, %s179
    $region4: #{tpu_custom_call.1} parent=1 // loop_header_branch
      %16 = sbr.rel (%p14) target = $region8
    $region5: #{tpu_custom_call.1} parent=1 // loop_body
      %s18 = ssub.s32 %s13, 1
      %s19 = ssub.s32 %s13, 2
      %s20 = sadd.s32 %s13, 1
      %s21 = ssub.s32 %s13, %s20
      %p22 = scmp.eq.s32.totalorder %s21, 0
      %s24 = sadd.s32 %s23, 1
      %s25 = scalar_select %p22, %s23, %s24
      %p28 = pneg %p22
      %p29 = scmp.eq.s32.totalorder %s13, 2
      %p30 = por %p28, %p29
      %p31 = scmp.ne.s32.totalorder %s23, %s26
      %p32 = scmp.eq.s32.totalorder %s13, 0
      %p33 = por %p31, %p32
      %p34 = scmp.ne.s32.totalorder %s23, %s26
      %p35 = scmp.eq.s32.totalorder %s18, 2
      %p36 = por %p34, %p35
      %p37 = scmp.ne.s32.totalorder %s26, %s27
      %p38 = scmp.eq.s32.totalorder %s18, 0
      %p39 = por %p37, %p38
      %p40 = scmp.ne.s32.totalorder %s26, %s27
      %p41 = scmp.eq.s32.totalorder %s19, 2
      %p42 = por %p40, %p41
      %p44 = scmp.ne.s32.totalorder %s27, %s43
      %p45 = scmp.eq.s32.totalorder %s19, 0
      %p46 = por %p44, %p45
      %s48 = sadd.s32 %s47, 1
      %p51 = scmp.eq.s32.totalorder %s13, 2
      %p52 = scmp.ne.s32.totalorder %s47, %s49
      %p53 = scmp.eq.s32.totalorder %s13, 0
      %p54 = por %p52, %p53
      %p55 = scmp.ne.s32.totalorder %s47, %s49
      %p56 = scmp.eq.s32.totalorder %s18, 2
      %p57 = por %p55, %p56
      %p58 = scmp.ne.s32.totalorder %s49, %s50
      %p59 = scmp.eq.s32.totalorder %s18, 0
      %p60 = por %p58, %p59
      %p61 = scmp.ne.s32.totalorder %s49, %s50
      %p62 = scmp.eq.s32.totalorder %s19, 2
      %p63 = por %p61, %p62
      %p65 = scmp.ne.s32.totalorder %s50, %s64
      %p66 = scmp.eq.s32.totalorder %s19, 0
      %p67 = por %p65, %p66
      %s69 = sadd.s32 %s68, 1
      %p72 = scmp.eq.s32.totalorder %s13, 2
      %p73 = scmp.ne.s32.totalorder %s68, %s70
      %p74 = scmp.eq.s32.totalorder %s13, 0
      %p75 = por %p73, %p74
      %p76 = scmp.ne.s32.totalorder %s68, %s70
      %p77 = scmp.eq.s32.totalorder %s18, 2
      %p78 = por %p76, %p77
      %p79 = scmp.ne.s32.totalorder %s70, %s71
      %p80 = scmp.eq.s32.totalorder %s18, 0
      %p81 = por %p79, %p80
      %p82 = scmp.ne.s32.totalorder %s70, %s71
      %p83 = scmp.eq.s32.totalorder %s19, 2
      %p84 = por %p82, %p83
      %p86 = scmp.ne.s32.totalorder %s71, %s85
      %p87 = scmp.eq.s32.totalorder %s19, 0
      %p88 = por %p86, %p87
      %s90 = sadd.s32 %s89, 1
      %p93 = scmp.eq.s32.totalorder %s13, 2
      %p94 = scmp.ne.s32.totalorder %s89, %s91
      %p95 = scmp.eq.s32.totalorder %s13, 0
      %p96 = por %p94, %p95
      %p97 = scmp.ne.s32.totalorder %s89, %s91
      %p98 = scmp.eq.s32.totalorder %s18, 2
      %p99 = por %p97, %p98
      %p100 = scmp.ne.s32.totalorder %s91, %s92
      %p101 = scmp.eq.s32.totalorder %s18, 0
      %p102 = por %p100, %p101
      %p103 = scmp.ne.s32.totalorder %s91, %s92
      %p104 = scmp.eq.s32.totalorder %s19, 2
      %p105 = por %p103, %p104
      %p107 = scmp.ne.s32.totalorder %s92, %s106
      %p108 = scmp.eq.s32.totalorder %s19, 0
      %p109 = por %p107, %p108
      %s111 = sadd.s32 %s110, 1
      %p114 = scmp.eq.s32.totalorder %s13, 2
      %p115 = scmp.ne.s32.totalorder %s110, %s112
      %p116 = scmp.eq.s32.totalorder %s13, 0
      %p117 = por %p115, %p116
      %p118 = scmp.ne.s32.totalorder %s110, %s112
      %p119 = scmp.eq.s32.totalorder %s18, 2
      %p120 = por %p118, %p119
      %p121 = scmp.ne.s32.totalorder %s112, %s113
      %p122 = scmp.eq.s32.totalorder %s18, 0
      %p123 = por %p121, %p122
      %p124 = scmp.ne.s32.totalorder %s112, %s113
      %p125 = scmp.eq.s32.totalorder %s19, 2
      %p126 = por %p124, %p125
      %p128 = scmp.ne.s32.totalorder %s113, %s127
      %p129 = scmp.eq.s32.totalorder %s19, 0
      %p130 = por %p128, %p129
      %s132 = sadd.s32 %s131, 1
      %p135 = scmp.eq.s32.totalorder %s13, 2
      %p136 = scmp.ne.s32.totalorder %s131, %s133
      %p137 = scmp.eq.s32.totalorder %s13, 0
      %p138 = por %p136, %p137
      %p139 = scmp.ne.s32.totalorder %s131, %s133
      %p140 = scmp.eq.s32.totalorder %s18, 2
      %p141 = por %p139, %p140
      %p142 = scmp.ne.s32.totalorder %s133, %s134
      %p143 = scmp.eq.s32.totalorder %s18, 0
      %p144 = por %p142, %p143
      %p145 = scmp.ne.s32.totalorder %s133, %s134
      %p146 = scmp.eq.s32.totalorder %s19, 2
      %p147 = por %p145, %p146
      %p149 = scmp.ne.s32.totalorder %s134, %s148
      %p150 = scmp.eq.s32.totalorder %s19, 0
      %p151 = por %p149, %p150
      %s153 = sadd.s32 %s152, 1
      %p156 = scmp.eq.s32.totalorder %s13, 2
      %p157 = scmp.ne.s32.totalorder %s152, %s154
      %p158 = scmp.eq.s32.totalorder %s13, 0
      %p159 = por %p157, %p158
      %p160 = scmp.ne.s32.totalorder %s152, %s154
      %p161 = scmp.eq.s32.totalorder %s18, 2
      %p162 = por %p160, %p161
      %p163 = scmp.ne.s32.totalorder %s154, %s155
      %p164 = scmp.eq.s32.totalorder %s18, 0
      %p165 = por %p163, %p164
      %p166 = scmp.ne.s32.totalorder %s154, %s155
      %p167 = scmp.eq.s32.totalorder %s19, 2
      %p168 = por %p166, %p167
      %p170 = scmp.ne.s32.totalorder %s155, %s169
      %p171 = scmp.eq.s32.totalorder %s19, 0
      %p172 = por %p170, %p171
      %s173 = ssub.s32 %s13, %s20
      %p174 = scmp.eq.s32.totalorder %s173, 0
      %s176 = sadd.s32 %s175, 1
      %s177 = scalar_select %p174, %s175, %s176
      %p180 = pneg %p174
      %p181 = scmp.eq.s32.totalorder %s13, 2
      %p182 = por %p180, %p181
      %p183 = scmp.ne.s32.totalorder %s175, %s178
      %p184 = scmp.eq.s32.totalorder %s13, 0
      %p185 = por %p183, %p184
      %p186 = scmp.ne.s32.totalorder %s175, %s178
      %p187 = scmp.eq.s32.totalorder %s18, 2
      %p188 = por %p186, %p187
      %p189 = scmp.ne.s32.totalorder %s178, %s179
      %p190 = scmp.eq.s32.totalorder %s18, 0
      %p191 = por %p189, %p190
      %p192 = scmp.ne.s32.totalorder %s178, %s179
      %p193 = scmp.eq.s32.totalorder %s19, 2
      %p194 = por %p192, %p193
      %p196 = scmp.ne.s32.totalorder %s179, %s195
      %p197 = scmp.eq.s32.totalorder %s19, 0
      %p198 = por %p196, %p197
      %p199 = scmp.le.s32.totalorder 1, %s13
      %p200 = scmp.lt.s32.totalorder %s13, 4
      %p201 = pnand %p199, %p200
      %p202 = pneg %p201
      // Predicated region
      $region9: #{tpu_custom_call.1} parent=5 // pred_check
        _
      $region10: #{tpu_custom_call.1} parent=5 // pred_check_branch
        %204 = sbr.rel (%p201) target = $region12
      $region11: #{tpu_custom_call.1} parent=5 // pred_region
        %s205 = ssub.s32 %s13, 1
        // Predicated region
        $region13: #{tpu_custom_call.1} parent=11 // pred_check
          %p206 = pneg %p60
        $region14: #{tpu_custom_call.1} parent=11 // pred_check_branch
          %208 = sbr.rel (%p206) target = $region16
        $region15: #{tpu_custom_call.1} parent=11 // pred_region
          _
        $region16: #{tpu_custom_call.1} parent=11 // pred_fallthru
          _
        // Predicated region
        $region17: #{tpu_custom_call.1} parent=11 // pred_check
          %p209 = pneg %p81
        $region18: #{tpu_custom_call.1} parent=11 // pred_check_branch
          %211 = sbr.rel (%p209) target = $region20
        $region19: #{tpu_custom_call.1} parent=11 // pred_region
          _
        $region20: #{tpu_custom_call.1} parent=11 // pred_fallthru
          _
        // Predicated region
        $region21: #{tpu_custom_call.1} parent=11 // pred_check
          %p212 = pneg %p102
        $region22: #{tpu_custom_call.1} parent=11 // pred_check_branch
          %214 = sbr.rel (%p212) target = $region24
        $region23: #{tpu_custom_call.1} parent=11 // pred_region
          _
        $region24: #{tpu_custom_call.1} parent=11 // pred_fallthru
          _
        // Predicated region
        $region25: #{tpu_custom_call.1} parent=11 // pred_check
          %p215 = pneg %p123
        $region26: #{tpu_custom_call.1} parent=11 // pred_check_branch
          %217 = sbr.rel (%p215) target = $region28
        $region27: #{tpu_custom_call.1} parent=11 // pred_region
          _
        $region28: #{tpu_custom_call.1} parent=11 // pred_fallthru
          _
        // Predicated region
        $region29: #{tpu_custom_call.1} parent=11 // pred_check
          %p218 = pneg %p144
        $region30: #{tpu_custom_call.1} parent=11 // pred_check_branch
          %220 = sbr.rel (%p218) target = $region32
        $region31: #{tpu_custom_call.1} parent=11 // pred_region
          _
        $region32: #{tpu_custom_call.1} parent=11 // pred_fallthru
          _
        // Predicated region
        $region33: #{tpu_custom_call.1} parent=11 // pred_check
          %p221 = pneg %p165
        $region34: #{tpu_custom_call.1} parent=11 // pred_check_branch
          %223 = sbr.rel (%p221) target = $region36
        $region35: #{tpu_custom_call.1} parent=11 // pred_region
          _
        $region36: #{tpu_custom_call.1} parent=11 // pred_fallthru
          _
      $region12: #{tpu_custom_call.1} parent=5 // pred_fallthru
        _
      %p224 = scmp.lt.s32.totalorder %s13, 3
      // Predicated region
      $region37: #{tpu_custom_call.1} parent=5 // pred_check
        %p225 = pneg %p224
      $region38: #{tpu_custom_call.1} parent=5 // pred_check_branch
        %227 = sbr.rel (%p225) target = $region40
      $region39: #{tpu_custom_call.1} parent=5 // pred_region
        // Predicated region
        $region41: #{tpu_custom_call.1} parent=39 // pred_check
          %p228 = pneg %p33
        $region42: #{tpu_custom_call.1} parent=39 // pred_check_branch
          %230 = sbr.rel (%p228) target = $region44
        $region43: #{tpu_custom_call.1} parent=39 // pred_region
          %s231 = smul.u32 16, %s13
          %s232 = ssub.s32 38, %s231
          %p233 = scmp.lt.s32.totalorder %s232, 16
          %s234 = scalar_select %p233, %s232, 16
          %s235 = smul.u32 128, %s234
          %p236 = scmp.lt.s32.totalorder %s231, 37
          %s237 = scalar_select %p236, %s231, 37
          %s238 = smul.addr %s237, 8
          %s239 = scalar_lea.vmem %s0, %s238
          %s240 = smul.u32 16, %s13
          %s241 = ssub.s32 38, %s240
          %p242 = scmp.lt.s32.totalorder %s241, 16
          %s243 = scalar_select %p242, %s241, 16
          %s244 = smul.u32 128, %s243
        $region44: #{tpu_custom_call.1} parent=39 // pred_fallthru
          _
      $region40: #{tpu_custom_call.1} parent=5 // pred_fallthru
        _
      %p245 = scmp.le.s32.totalorder 1, %s13
      %p246 = scmp.lt.s32.totalorder %s13, 4
      %p247 = pnand %p245, %p246
      %p248 = pneg %p247
      // Predicated region
      $region45: #{tpu_custom_call.1} parent=5 // pred_check
        _
      $region46: #{tpu_custom_call.1} parent=5 // pred_check_branch
        %250 = sbr.rel (%p247) target = $region48
      $region47: #{tpu_custom_call.1} parent=5 // pred_region
        %s251 = ssub.s32 %s13, 1
        %s252 = smul.u32 16, %s18
        %s253 = ssub.s32 38, %s252
        %p254 = scmp.lt.s32.totalorder %s253, 16
        %s255 = scalar_select %p254, %s253, 16
        %s256 = smul.u32 128, %s255
        %p257 = scmp.lt.s32.totalorder %s252, 37
        %s258 = scalar_select %p257, %s252, 37
        %s259 = smul.addr %s258, 8
        %s260 = scalar_lea.vmem %s0, %s259
        %p261 = pneg %p39
        %p262 = pneg %p36
        %p263 = pneg %p60
        %p264 = pneg %p57
        %p265 = pneg %p81
        %p266 = pneg %p78
        %p267 = pneg %p102
        %p268 = pneg %p99
        %p269 = pneg %p123
        %p270 = pneg %p120
        %p271 = pneg %p144
        %p272 = pneg %p141
        %p273 = pneg %p165
        %p274 = pneg %p162
        %p275 = pneg %p191
        %p276 = pneg %p188
        %s277 = sand.u32 %s178, 1
        %s278 = sand.u32 %s178, 1
        %s279 = smul.addr %s278, 128
        %s280 = scalar_lea.vmem [#allocation2], %s279
        %s281 = smul.u32 16, %s18
        %s282 = ssub.s32 38, %s281
        %p283 = scmp.lt.s32.totalorder %s282, 16
        %s284 = scalar_select %p283, %s282, 16
        %s285 = smul.u32 128, %s284
        %p286 = scmp.lt.s32.totalorder %s281, 37
        %s287 = scalar_select %p286, %s281, 37
        %s288 = smul.addr %s287, 8
        %s289 = scalar_lea.vmem %s0, %s288
        %s290 = smul.u32 16, %s18
        %s291 = ssub.s32 38, %s290
        %p292 = scmp.lt.s32.totalorder %s291, 16
        %s293 = scalar_select %p292, %s291, 16
        %s294 = smul.u32 128, %s293
        %s295 = smul.u32 16, %s18
        %s296 = ssub.s32 38, %s295
        %p297 = scmp.lt.s32.totalorder %s296, 16
        %s298 = scalar_select %p297, %s296, 16
        %s299 = smul.u32 128, %s298
        %v300 = vld [vmem:[%s1] sm:$0xff]
        %v301 = vld [vmem:[%s1 + $0x8] sm:$0xff]
        %v302 = vld [vmem:[%s1 + $0x10] sm:$0xff]
        %v303 = vld [vmem:[%s1 + $0x18] sm:$0xff]
        %v304 = vld [vmem:[%s2] sm:$0xff]
        %v305 = vld [vmem:[%s2 + $0x8] sm:$0xff]
        %v306 = vld [vmem:[%s2 + $0x10] sm:$0xff]
        %v307 = vld [vmem:[%s2 + $0x18] sm:$0xff]
        %v308 = vld [vmem:[%s3] sm:$0xff]
        %v309 = vld [vmem:[%s3 + $0x8] sm:$0xff]
        %v310 = vld [vmem:[%s3 + $0x10] sm:$0xff]
        %v311 = vld [vmem:[%s3 + $0x18] sm:$0xff]
        %v312 = vld [vmem:[%s4] sm:$0xff]
        %v313 = vld [vmem:[%s4 + $0x8] sm:$0xff]
        %v314 = vld [vmem:[%s4 + $0x10] sm:$0xff]
        %v315 = vld [vmem:[%s4 + $0x18] sm:$0xff]
        %v316 = vld [vmem:[%s5] sm:$0xff]
        %v317 = vld [vmem:[%s6] sm:$0xff]
        %v318 = vld [vmem:[%s289] sm:$0xff]
        %v319 = vld [vmem:[%s289 + $0x8] sm:$0xff]
        %v320 = vld [vmem:[%s289 + $0x10] sm:$0xff]
        %v321 = vld [vmem:[%s289 + $0x18] sm:$0xff]
        %v322 = vld [vmem:[%s289 + $0x20] sm:$0xff]
        %v323 = vld [vmem:[%s289 + $0x28] sm:$0xff]
        %v324 = vld [vmem:[%s289 + $0x30] sm:$0xff]
        %v325 = vld [vmem:[%s289 + $0x38] sm:$0xff]
        %v326 = vld [vmem:[%s289 + $0x40] sm:$0xff]
        %v327 = vld [vmem:[%s289 + $0x48] sm:$0xff]
        %v328 = vld [vmem:[%s289 + $0x50] sm:$0xff]
        %v329 = vld [vmem:[%s289 + $0x58] sm:$0xff]
        %v330 = vld [vmem:[%s289 + $0x60] sm:$0xff]
        %v331 = vld [vmem:[%s289 + $0x68] sm:$0xff]
        %v332 = vld [vmem:[%s289 + $0x70] sm:$0xff]
        %v333 = vld [vmem:[%s289 + $0x78] sm:$0xff]
        %335 = vset.pattern.permute.xlu0 0
        %336 = vperm.xlu0 %335, %v304
        %v337 = vpop.permute.xlu0 %336
        %340 = vset.pattern.permute.xlu0 0
        %341 = vperm.xlu0 %340, %v305
        %v342 = vpop.permute.xlu0 %341
        %345 = vset.pattern.permute.xlu0 0
        %346 = vperm.xlu0 %345, %v306
        %v347 = vpop.permute.xlu0 %346
        %350 = vset.pattern.permute.xlu0 0
        %351 = vperm.xlu0 %350, %v307
        %v352 = vpop.permute.xlu0 %351
        %vm354 = vcmask 64512
        %v356 = vsel %vm354, %v300, 0
        %v359 = vsel %vm354, %v301, 0
        %v362 = vsel %vm354, %v302, 0
        %v365 = vsel %vm354, %v303, 0
        %v368 = vsel %vm354, %v318, 0
        %v371 = vsel %vm354, %v319, 0
        %v374 = vsel %vm354, %v320, 0
        %v377 = vsel %vm354, %v321, 0
        %v380 = vsel %vm354, %v322, 0
        %v383 = vsel %vm354, %v323, 0
        %v386 = vsel %vm354, %v324, 0
        %v389 = vsel %vm354, %v325, 0
        %v392 = vsel %vm354, %v326, 0
        %v395 = vsel %vm354, %v327, 0
        %v398 = vsel %vm354, %v328, 0
        %v401 = vsel %vm354, %v329, 0
        %v404 = vsel %vm354, %v330, 0
        %v407 = vsel %vm354, %v331, 0
        %v410 = vsel %vm354, %v332, 0
        %v413 = vsel %vm354, %v333, 0
        %415 = vmatprep.subr.mxu0 0.0
        %416 = vmatpush1.xpose.msra.mxu0 %v413
        %417 = vmatprep.subr.mxu0 0.0
        %418 = vmatpush1.xpose.msra.mxu0 %v410
        %419 = vmatprep.subr.mxu0 0.0
        %420 = vmatpush1.xpose.msra.mxu0 %v407
        %421 = vmatprep.subr.mxu0 0.0
        %422 = vmatpush1.xpose.msra.mxu0 %v404
        %423 = vmatprep.subr.mxu0 0.0
        %424 = vmatpush1.xpose.msra.mxu0 %v401
        %425 = vmatprep.subr.mxu0 0.0
        %426 = vmatpush1.xpose.msra.mxu0 %v398
        %427 = vmatprep.subr.mxu0 0.0
        %428 = vmatpush1.xpose.msra.mxu0 %v395
        %429 = vmatprep.subr.mxu0 0.0
        %430 = vmatpush1.xpose.msra.mxu0 %v392
        %431 = vmatprep.subr.mxu0 0.0
        %432 = vmatpush1.xpose.msra.mxu0 %v389
        %433 = vmatprep.subr.mxu0 0.0
        %434 = vmatpush1.xpose.msra.mxu0 %v386
        %435 = vmatprep.subr.mxu0 0.0
        %436 = vmatpush1.xpose.msra.mxu0 %v383
        %437 = vmatprep.subr.mxu0 0.0
        %438 = vmatpush1.xpose.msra.mxu0 %v380
        %439 = vmatprep.subr.mxu0 0.0
        %440 = vmatpush1.xpose.msra.mxu0 %v377
        %441 = vmatprep.subr.mxu0 0.0
        %442 = vmatpush1.xpose.msra.mxu0 %v374
        %443 = vmatprep.subr.mxu0 0.0
        %444 = vmatpush1.xpose.msra.mxu0 %v371
        %445 = vmatprep.subr.mxu0 0.0
        %446 = vmatpush1.xpose.msra.mxu0 %v368
        %447 = vmatprep.subr.mxu0 0.0
        %448 = vmatpush2.xpose.msra.mxu0 0.0
        %449 = vmatprep.subr.mxu0 0.0
        %450 = vmatpush2.xpose.msra.mxu0 0.0
        %451 = vmatprep.subr.mxu0 0.0
        %452 = vmatpush2.xpose.msra.mxu0 0.0
        %453 = vmatprep.subr.mxu0 0.0
        %454 = vmatpush2.xpose.msra.mxu0 0.0
        %455 = vmatprep.subr.mxu0 0.0
        %456 = vmatpush2.xpose.msra.mxu0 0.0
        %457 = vmatprep.subr.mxu0 0.0
        %458 = vmatpush2.xpose.msra.mxu0 0.0
        %459 = vmatprep.subr.mxu0 0.0
        %460 = vmatpush2.xpose.msra.mxu0 0.0
        %461 = vmatprep.subr.mxu0 0.0
        %462 = vmatpush2.xpose.msra.mxu0 0.0
        %463 = vmatprep.subr.mxu0 0.0
        %464 = vmatpush2.xpose.msra.mxu0 0.0
        %465 = vmatprep.subr.mxu0 0.0
        %466 = vmatpush2.xpose.msra.mxu0 0.0
        %467 = vmatprep.subr.mxu0 0.0
        %468 = vmatpush2.xpose.msra.mxu0 0.0
        %469 = vmatprep.subr.mxu0 0.0
        %470 = vmatpush2.xpose.msra.mxu0 0.0
        %471 = vmatprep.subr.mxu0 0.0
        %472 = vmatpush2.xpose.msra.mxu0 0.0
        %473 = vmatprep.subr.mxu0 0.0
        %474 = vmatpush2.xpose.msra.mxu0 0.0
        %475 = vmatprep.subr.mxu0 0.0
        %476 = vmatpush2.xpose.msra.mxu0 0.0
        %477 = vmatprep.subr.mxu0 0.0
        %478 = vmatpush2.xpose.msra.mxu0 0.0
        %479 = vmatprep.mubr.f32.mxu0 0.0
        %480 = vmatmul.mubr.f32.gmra.mxu0 %v356
        %v481 = vpop.f32.mrf.mxu0
        %v482 = vadd.f32 %v337, %v481
        %v483 = vpop.f32.mrf.mxu0
        %484 = vmatprep.mubr.f32.mxu0 0.0
        %485 = vmatmul.mubr.f32.gmra.mxu0 %v359
        %v486 = vpop.f32.mrf.mxu0
        %v487 = vadd.f32 %v342, %v486
        %v488 = vpop.f32.mrf.mxu0
        %489 = vmatprep.mubr.f32.mxu0 0.0
        %490 = vmatmul.mubr.f32.gmra.mxu0 %v362
        %v491 = vpop.f32.mrf.mxu0
        %v492 = vadd.f32 %v347, %v491
        %v493 = vpop.f32.mrf.mxu0
        %494 = vmatprep.mubr.f32.mxu0 0.0
        %495 = vmatmul.mubr.f32.gmra.mxu0 %v365
        %v496 = vpop.f32.mrf.mxu0
        %v497 = vadd.f32 %v352, %v496
        %v498 = vpop.f32.mrf.mxu0
        %499 = vdwg.mxu0
        %v500 = vtanh.pop %v482
        %v501 = vtanh.pop %v487
        %v502 = vtanh.pop %v492
        %v503 = vtanh.pop %v497
        %505 = vset.pattern.permute.xlu0 0
        %506 = vperm.xlu0 %505, %v312
        %v507 = vpop.permute.xlu0 %506
        %510 = vset.pattern.permute.xlu0 0
        %511 = vperm.xlu0 %510, %v313
        %v512 = vpop.permute.xlu0 %511
        %515 = vset.pattern.permute.xlu0 0
        %516 = vperm.xlu0 %515, %v314
        %v517 = vpop.permute.xlu0 %516
        %520 = vset.pattern.permute.xlu0 0
        %521 = vperm.xlu0 %520, %v315
        %v522 = vpop.permute.xlu0 %521
        %vm524 = vcmask 261120
        %v526 = vsel %vm524, %v308, 0
        %v529 = vsel %vm524, %v309, 0
        %v532 = vsel %vm524, %v310, 0
        %v535 = vsel %vm524, %v311, 0
        %537 = vmatprep.subr.mxu0 0.0
        %538 = vmatpush1.msra.mxu0 0.0
        %539 = vmatprep.subr.mxu0 0.0
        %540 = vmatpush1.msra.mxu0 0.0
        %541 = vmatprep.subr.mxu0 0.0
        %542 = vmatpush1.msra.mxu0 0.0
        %543 = vmatprep.subr.mxu0 0.0
        %544 = vmatpush1.msra.mxu0 0.0
        %545 = vmatprep.subr.mxu0 0.0
        %546 = vmatpush1.msra.mxu0 0.0
        %547 = vmatprep.subr.mxu0 0.0
        %548 = vmatpush1.msra.mxu0 0.0
        %549 = vmatprep.subr.mxu0 0.0
        %550 = vmatpush1.msra.mxu0 0.0
        %551 = vmatprep.subr.mxu0 0.0
        %552 = vmatpush1.msra.mxu0 0.0
        %553 = vmatprep.subr.mxu0 0.0
        %554 = vmatpush1.msra.mxu0 0.0
        %555 = vmatprep.subr.mxu0 0.0
        %556 = vmatpush1.msra.mxu0 0.0
        %557 = vmatprep.subr.mxu0 0.0
        %558 = vmatpush1.msra.mxu0 0.0
        %559 = vmatprep.subr.mxu0 0.0
        %560 = vmatpush1.msra.mxu0 0.0
        %561 = vmatprep.subr.mxu0 0.0
        %562 = vmatpush1.msra.mxu0 %v503
        %563 = vmatprep.subr.mxu0 0.0
        %564 = vmatpush1.msra.mxu0 %v502
        %565 = vmatprep.subr.mxu0 0.0
        %566 = vmatpush1.msra.mxu0 %v501
        %567 = vmatprep.subr.mxu0 0.0
        %568 = vmatpush1.msra.mxu0 %v500
        %569 = vmatprep.subr.mxu0 0.0
        %570 = vmatpush2.msra.mxu0 0.0
        %571 = vmatprep.subr.mxu0 0.0
        %572 = vmatpush2.msra.mxu0 0.0
        %573 = vmatprep.subr.mxu0 0.0
        %574 = vmatpush2.msra.mxu0 0.0
        %575 = vmatprep.subr.mxu0 0.0
        %576 = vmatpush2.msra.mxu0 0.0
        %577 = vmatprep.subr.mxu0 0.0
        %578 = vmatpush2.msra.mxu0 0.0
        %579 = vmatprep.subr.mxu0 0.0
        %580 = vmatpush2.msra.mxu0 0.0
        %581 = vmatprep.subr.mxu0 0.0
        %582 = vmatpush2.msra.mxu0 0.0
        %583 = vmatprep.subr.mxu0 0.0
        %584 = vmatpush2.msra.mxu0 0.0
        %585 = vmatprep.subr.mxu0 0.0
        %586 = vmatpush2.msra.mxu0 0.0
        %587 = vmatprep.subr.mxu0 0.0
        %588 = vmatpush2.msra.mxu0 0.0
        %589 = vmatprep.subr.mxu0 0.0
        %590 = vmatpush2.msra.mxu0 0.0
        %591 = vmatprep.subr.mxu0 0.0
        %592 = vmatpush2.msra.mxu0 0.0
        %593 = vmatprep.subr.mxu0 0.0
        %594 = vmatpush2.msra.mxu0 0.0
        %595 = vmatprep.subr.mxu0 0.0
        %596 = vmatpush2.msra.mxu0 0.0
        %597 = vmatprep.subr.mxu0 0.0
        %598 = vmatpush2.msra.mxu0 0.0
        %599 = vmatprep.subr.mxu0 0.0
        %600 = vmatpush2.msra.mxu0 0.0
        %601 = vmatprep.mubr.f32.mxu0 0.0
        %602 = vmatmul.mubr.f32.gmra.mxu0 %v526
        %v603 = vpop.f32.mrf.mxu0
        %v604 = vadd.f32 %v507, %v603
        %v605 = vpop.f32.mrf.mxu0
        %606 = vmatprep.mubr.f32.mxu0 0.0
        %607 = vmatmul.mubr.f32.gmra.mxu0 %v529
        %v608 = vpop.f32.mrf.mxu0
        %v609 = vadd.f32 %v512, %v608
        %v610 = vpop.f32.mrf.mxu0
        %611 = vmatprep.mubr.f32.mxu0 0.0
        %612 = vmatmul.mubr.f32.gmra.mxu0 %v532
        %v613 = vpop.f32.mrf.mxu0
        %v614 = vadd.f32 %v517, %v613
        %v615 = vpop.f32.mrf.mxu0
        %616 = vmatprep.mubr.f32.mxu0 0.0
        %617 = vmatmul.mubr.f32.gmra.mxu0 %v535
        %v618 = vpop.f32.mrf.mxu0
        %v619 = vadd.f32 %v522, %v618
        %v620 = vpop.f32.mrf.mxu0
        %621 = vdwg.mxu0
        %v622 = vtanh.pop %v604
        %v623 = vtanh.pop %v609
        %v624 = vtanh.pop %v614
        %v625 = vtanh.pop %v619
        %627 = vset.pattern.permute.xlu0 0
        %628 = vperm.xlu0 %627, %v317
        %v629 = vpop.permute.xlu0 %628
        %v632 = vsel %vm524, %v316, 0
        %634 = vmatprep.subr.mxu0 0.0
        %635 = vmatpush1.msra.mxu0 0.0
        %636 = vmatprep.subr.mxu0 0.0
        %637 = vmatpush1.msra.mxu0 0.0
        %638 = vmatprep.subr.mxu0 0.0
        %639 = vmatpush1.msra.mxu0 0.0
        %640 = vmatprep.subr.mxu0 0.0
        %641 = vmatpush1.msra.mxu0 0.0
        %642 = vmatprep.subr.mxu0 0.0
        %643 = vmatpush1.msra.mxu0 0.0
        %644 = vmatprep.subr.mxu0 0.0
        %645 = vmatpush1.msra.mxu0 0.0
        %646 = vmatprep.subr.mxu0 0.0
        %647 = vmatpush1.msra.mxu0 0.0
        %648 = vmatprep.subr.mxu0 0.0
        %649 = vmatpush1.msra.mxu0 0.0
        %650 = vmatprep.subr.mxu0 0.0
        %651 = vmatpush1.msra.mxu0 0.0
        %652 = vmatprep.subr.mxu0 0.0
        %653 = vmatpush1.msra.mxu0 0.0
        %654 = vmatprep.subr.mxu0 0.0
        %655 = vmatpush1.msra.mxu0 0.0
        %656 = vmatprep.subr.mxu0 0.0
        %657 = vmatpush1.msra.mxu0 0.0
        %658 = vmatprep.subr.mxu0 0.0
        %659 = vmatpush1.msra.mxu0 %v625
        %660 = vmatprep.subr.mxu0 0.0
        %661 = vmatpush1.msra.mxu0 %v624
        %662 = vmatprep.subr.mxu0 0.0
        %663 = vmatpush1.msra.mxu0 %v623
        %664 = vmatprep.subr.mxu0 0.0
        %665 = vmatpush1.msra.mxu0 %v622
        %666 = vmatprep.subr.mxu0 0.0
        %667 = vmatpush2.msra.mxu0 0.0
        %668 = vmatprep.subr.mxu0 0.0
        %669 = vmatpush2.msra.mxu0 0.0
        %670 = vmatprep.subr.mxu0 0.0
        %671 = vmatpush2.msra.mxu0 0.0
        %672 = vmatprep.subr.mxu0 0.0
        %673 = vmatpush2.msra.mxu0 0.0
        %674 = vmatprep.subr.mxu0 0.0
        %675 = vmatpush2.msra.mxu0 0.0
        %676 = vmatprep.subr.mxu0 0.0
        %677 = vmatpush2.msra.mxu0 0.0
        %678 = vmatprep.subr.mxu0 0.0
        %679 = vmatpush2.msra.mxu0 0.0
        %680 = vmatprep.subr.mxu0 0.0
        %681 = vmatpush2.msra.mxu0 0.0
        %682 = vmatprep.subr.mxu0 0.0
        %683 = vmatpush2.msra.mxu0 0.0
        %684 = vmatprep.subr.mxu0 0.0
        %685 = vmatpush2.msra.mxu0 0.0
        %686 = vmatprep.subr.mxu0 0.0
        %687 = vmatpush2.msra.mxu0 0.0
        %688 = vmatprep.subr.mxu0 0.0
        %689 = vmatpush2.msra.mxu0 0.0
        %690 = vmatprep.subr.mxu0 0.0
        %691 = vmatpush2.msra.mxu0 0.0
        %692 = vmatprep.subr.mxu0 0.0
        %693 = vmatpush2.msra.mxu0 0.0
        %694 = vmatprep.subr.mxu0 0.0
        %695 = vmatpush2.msra.mxu0 0.0
        %696 = vmatprep.subr.mxu0 0.0
        %697 = vmatpush2.msra.mxu0 0.0
        %698 = vmatprep.mubr.f32.mxu0 0.0
        %699 = vmatmul.mubr.f32.gmra.mxu0 %v632
        %v700 = vpop.f32.mrf.mxu0
        %v701 = vadd.f32 %v629, %v700
        %v702 = vpop.f32.mrf.mxu0
        %703 = vdwg.mxu0
        %704 = vxpose.xlu0.b32.start [1/16] %v701, 128
        %705 = vxpose.xlu0.b32.cont [2/16] 0.0, 128
        %706 = vxpose.xlu0.b32.cont [3/16] 0.0, 128
        %707 = vxpose.xlu0.b32.cont [4/16] 0.0, 128
        %708 = vxpose.xlu0.b32.cont [5/16] 0.0, 128
        %709 = vxpose.xlu0.b32.cont [6/16] 0.0, 128
        %710 = vxpose.xlu0.b32.cont [7/16] 0.0, 128
        %711 = vxpose.xlu0.b32.cont [8/16] 0.0, 128
        %712 = vxpose.xlu0.b32.cont [9/16] 0.0, 128
        %713 = vxpose.xlu0.b32.cont [10/16] 0.0, 128
        %714 = vxpose.xlu0.b32.cont [11/16] 0.0, 128
        %715 = vxpose.xlu0.b32.cont [12/16] 0.0, 128
        %716 = vxpose.xlu0.b32.cont [13/16] 0.0, 128
        %717 = vxpose.xlu0.b32.cont [14/16] 0.0, 128
        %718 = vxpose.xlu0.b32.cont [15/16] 0.0, 128
        %719 = vxpose.xlu0.b32.end [16/16] 0.0, 128
        %v720 = vpop.trf.xlu0
        %v721 = vpop.trf.xlu0
        %v722 = vpop.trf.xlu0
        %v723 = vpop.trf.xlu0
        %v724 = vpop.trf.xlu0
        %v725 = vpop.trf.xlu0
        %v726 = vpop.trf.xlu0
        %v727 = vpop.trf.xlu0
        %v728 = vpop.trf.xlu0
        %v729 = vpop.trf.xlu0
        %v730 = vpop.trf.xlu0
        %v731 = vpop.trf.xlu0
        %v732 = vpop.trf.xlu0
        %v733 = vpop.trf.xlu0
        %v734 = vpop.trf.xlu0
        %v735 = vpop.trf.xlu0
        %736 = vst.msk [vmem:[%s280] sm:$0xff] %vm354, %v720
        %737 = vst.msk [vmem:[%s280 + $0x8] sm:$0xff] %vm354, %v721
        %738 = vst.msk [vmem:[%s280 + $0x10] sm:$0xff] %vm354, %v722
        %739 = vst.msk [vmem:[%s280 + $0x18] sm:$0xff] %vm354, %v723
        %740 = vst.msk [vmem:[%s280 + $0x20] sm:$0xff] %vm354, %v724
        %741 = vst.msk [vmem:[%s280 + $0x28] sm:$0xff] %vm354, %v725
        %742 = vst.msk [vmem:[%s280 + $0x30] sm:$0xff] %vm354, %v726
        %743 = vst.msk [vmem:[%s280 + $0x38] sm:$0xff] %vm354, %v727
        %744 = vst.msk [vmem:[%s280 + $0x40] sm:$0xff] %vm354, %v728
        %745 = vst.msk [vmem:[%s280 + $0x48] sm:$0xff] %vm354, %v729
        %746 = vst.msk [vmem:[%s280 + $0x50] sm:$0xff] %vm354, %v730
        %747 = vst.msk [vmem:[%s280 + $0x58] sm:$0xff] %vm354, %v731
        %748 = vst.msk [vmem:[%s280 + $0x60] sm:$0xff] %vm354, %v732
        %749 = vst.msk [vmem:[%s280 + $0x68] sm:$0xff] %vm354, %v733
        %750 = vst.msk [vmem:[%s280 + $0x70] sm:$0xff] %vm354, %v734
        %751 = vst.msk [vmem:[%s280 + $0x78] sm:$0xff] %vm354, %v735
        %s752 = sand.u32 %s178, 1
        %s753 = sand.u32 %s178, 1
        %s754 = smul.addr %s753, 128
        %s755 = scalar_lea.vmem [#allocation2], %s754
        // Predicated region
        $region49: #{tpu_custom_call.1} parent=47 // pred_check
          %p756 = pneg %p188
        $region50: #{tpu_custom_call.1} parent=47 // pred_check_branch
          %758 = sbr.rel (%p756) target = $region52
        $region51: #{tpu_custom_call.1} parent=47 // pred_region
          %s759 = smul.u32 16, %s18
          %s760 = ssub.s32 38, %s759
          %p761 = scmp.lt.s32.totalorder %s760, 16
          %s762 = scalar_select %p761, %s760, 16
          %s763 = smul.u32 128, %s762
          %p764 = scmp.ne.s32.totalorder 0, %s763
          %s765 = smul.addr %s759, 8
          %s766 = scalar_lea.vmem %s7, %s765
          // Predicated region
          $region53: #{tpu_custom_call.1} parent=51 // pred_check
            %p767 = pneg %p764
          $region54: #{tpu_custom_call.1} parent=51 // pred_check_branch
            %769 = sbr.rel (%p767) target = $region56
          $region55: #{tpu_custom_call.1} parent=51 // pred_region
            // Predicated region
            $region57: #{tpu_custom_call.1} parent=55 // pred_check
              _
            $region58: #{tpu_custom_call.1} parent=55 // pred_check_branch
              %771 = sbr.rel (0) target = $region60
            $region59: #{tpu_custom_call.1} parent=55 // pred_region
              // Predicated region
              $region79: #{tpu_custom_call.1} parent=59 // pred_check
                _
              $region80: #{tpu_custom_call.1} parent=59 // pred_check_branch
                %851 = sbr.rel (0) target = $region82
              $region81: #{tpu_custom_call.1} parent=59 // pred_region
                %s852 = sshrl.u32 %s762, 4
                // While loop
                $region83: #{tpu_custom_call.1} parent=81 // loop_pre_header
                  _
                $region84: #{tpu_custom_call.1} parent=81 // loop_header
                  %s854 = sphi 0, %s856
                  %p855 = scmp.ge.s32.totalorder %s854, %s852
                  %s859 = sphi 0, %s896
                  %s860 = sphi %s755, %s899
                  %s861 = sphi %s766, %s900
                $region85: #{tpu_custom_call.1} parent=81 // loop_header_branch
                  %858 = sbr.rel (%p855) target = $region89
                $region86: #{tpu_custom_call.1} parent=81 // loop_body
                  %v862 = vld [vmem:[%s860] sm:$0xff]
                  %863 = vst [vmem:[%s861] sm:$0xff] %v862
                  %v864 = vld [vmem:[%s860 + $0x8] sm:$0xff]
                  %865 = vst [vmem:[%s861 + $0x8] sm:$0xff] %v864
                  %v866 = vld [vmem:[%s860 + $0x10] sm:$0xff]
                  %867 = vst [vmem:[%s861 + $0x10] sm:$0xff] %v866
                  %v868 = vld [vmem:[%s860 + $0x18] sm:$0xff]
                  %869 = vst [vmem:[%s861 + $0x18] sm:$0xff] %v868
                  %v870 = vld [vmem:[%s860 + $0x20] sm:$0xff]
                  %871 = vst [vmem:[%s861 + $0x20] sm:$0xff] %v870
                  %v872 = vld [vmem:[%s860 + $0x28] sm:$0xff]
                  %873 = vst [vmem:[%s861 + $0x28] sm:$0xff] %v872
                  %v874 = vld [vmem:[%s860 + $0x30] sm:$0xff]
                  %875 = vst [vmem:[%s861 + $0x30] sm:$0xff] %v874
                  %v876 = vld [vmem:[%s860 + $0x38] sm:$0xff]
                  %877 = vst [vmem:[%s861 + $0x38] sm:$0xff] %v876
                  %v878 = vld [vmem:[%s860 + $0x40] sm:$0xff]
                  %879 = vst [vmem:[%s861 + $0x40] sm:$0xff] %v878
                  %v880 = vld [vmem:[%s860 + $0x48] sm:$0xff]
                  %881 = vst [vmem:[%s861 + $0x48] sm:$0xff] %v880
                  %v882 = vld [vmem:[%s860 + $0x50] sm:$0xff]
                  %883 = vst [vmem:[%s861 + $0x50] sm:$0xff] %v882
                  %v884 = vld [vmem:[%s860 + $0x58] sm:$0xff]
                  %885 = vst [vmem:[%s861 + $0x58] sm:$0xff] %v884
                  %v886 = vld [vmem:[%s860 + $0x60] sm:$0xff]
                  %887 = vst [vmem:[%s861 + $0x60] sm:$0xff] %v886
                  %v888 = vld [vmem:[%s860 + $0x68] sm:$0xff]
                  %889 = vst [vmem:[%s861 + $0x68] sm:$0xff] %v888
                  %v890 = vld [vmem:[%s860 + $0x70] sm:$0xff]
                  %891 = vst [vmem:[%s861 + $0x70] sm:$0xff] %v890
                  %v892 = vld [vmem:[%s860 + $0x78] sm:$0xff]
                  %893 = vst [vmem:[%s861 + $0x78] sm:$0xff] %v892
                  %s894 = sadd.s32 1, %s859
                  %p895 = scmp.ge.s32.totalorder %s894, %s852
                  %s896 = scalar_select %p895, 0, %s894
                  %s897 = smul.u32 %s896, 128
                  %s898 = smul.u32 %s896, 128
                  %s899 = scalar_lea.vmem %s755, %s897 [#allocation2]
                  %s900 = scalar_lea.vmem %s766, %s898
                $region87: #{tpu_custom_call.1} parent=81 // loop_footer
                  %s856 = sadd.s32 %s854, 1
                $region88: #{tpu_custom_call.1} parent=81 // loop_footer_branch
                  %853 = sbr.rel target = $region84
                $region89: #{tpu_custom_call.1} parent=81 // loop_exit
                  _
                %s901 = sshrl.u32 %s762, 4
                %s902 = sand.u32 %s762, 15
                %s903 = smul.u32 %s901, 16
                %s904 = smul.u32 8, %s903
                %s905 = scalar_lea.vmem %s755, %s904 [#allocation2]
                %s906 = smul.u32 8, %s903
                %s907 = scalar_lea.vmem %s766, %s906
                // While loop
                $region90: #{tpu_custom_call.1} parent=81 // loop_pre_header
                  _
                $region91: #{tpu_custom_call.1} parent=81 // loop_header
                  %s909 = sphi 0, %s911
                  %p910 = scmp.ge.s32.totalorder %s909, %s902
                  %s914 = sphi 0, %s921
                  %s915 = sphi %s905, %s924
                  %s916 = sphi %s907, %s925
                $region92: #{tpu_custom_call.1} parent=81 // loop_header_branch
                  %913 = sbr.rel (%p910) target = $region96
                $region93: #{tpu_custom_call.1} parent=81 // loop_body
                  %v917 = vld [vmem:[%s915] sm:$0xff]
                  %918 = vst [vmem:[%s916] sm:$0xff] %v917
                  %s919 = sadd.s32 1, %s914
                  %p920 = scmp.ge.s32.totalorder %s919, %s902
                  %s921 = scalar_select %p920, 0, %s919
                  %s922 = smul.u32 %s921, 8
                  %s923 = smul.u32 %s921, 8
                  %s924 = scalar_lea.vmem %s905, %s922 [#allocation2]
                  %s925 = scalar_lea.vmem %s907, %s923
                $region94: #{tpu_custom_call.1} parent=81 // loop_footer
                  %s911 = sadd.s32 %s909, 1
                $region95: #{tpu_custom_call.1} parent=81 // loop_footer_branch
                  %908 = sbr.rel target = $region91
                $region96: #{tpu_custom_call.1} parent=81 // loop_exit
                  _
              $region82: #{tpu_custom_call.1} parent=59 // pred_fallthru
                _
              // Predicated region
              $region97: #{tpu_custom_call.1} parent=59 // pred_check
                _
              $region98: #{tpu_custom_call.1} parent=59 // pred_check_branch
                %927 = sbr.rel target = $region100
              $region99: #{tpu_custom_call.1} parent=59 // pred_region
                _
              $region100: #{tpu_custom_call.1} parent=59 // pred_fallthru
                _
            $region60: #{tpu_custom_call.1} parent=55 // pred_fallthru
              _
            // Predicated region
            $region61: #{tpu_custom_call.1} parent=55 // pred_check
              _
            $region62: #{tpu_custom_call.1} parent=55 // pred_check_branch
              %773 = sbr.rel target = $region64
            $region63: #{tpu_custom_call.1} parent=55 // pred_region
              %s775 = ssub.s32 256, 1
              %s776 = sshrl.u32 %s762, 4
              // While loop
              $region65: #{tpu_custom_call.1} parent=63 // loop_pre_header
                _
              $region66: #{tpu_custom_call.1} parent=63 // loop_header
                %s778 = sphi 0, %s780
                %p779 = scmp.ge.s32.totalorder %s778, %s776
                %s783 = sphi 0, %s820
                %s784 = sphi %s755, %s823
                %s785 = sphi %s766, %s824
              $region67: #{tpu_custom_call.1} parent=63 // loop_header_branch
                %782 = sbr.rel (%p779) target = $region71
              $region68: #{tpu_custom_call.1} parent=63 // loop_body
                %v786 = vld [vmem:[%s784] sm:%s775]
                %787 = vst [vmem:[%s785] sm:%s775] %v786
                %v788 = vld [vmem:[%s784 + $0x8] sm:%s775]
                %789 = vst [vmem:[%s785 + $0x8] sm:%s775] %v788
                %v790 = vld [vmem:[%s784 + $0x10] sm:%s775]
                %791 = vst [vmem:[%s785 + $0x10] sm:%s775] %v790
                %v792 = vld [vmem:[%s784 + $0x18] sm:%s775]
                %793 = vst [vmem:[%s785 + $0x18] sm:%s775] %v792
                %v794 = vld [vmem:[%s784 + $0x20] sm:%s775]
                %795 = vst [vmem:[%s785 + $0x20] sm:%s775] %v794
                %v796 = vld [vmem:[%s784 + $0x28] sm:%s775]
                %797 = vst [vmem:[%s785 + $0x28] sm:%s775] %v796
                %v798 = vld [vmem:[%s784 + $0x30] sm:%s775]
                %799 = vst [vmem:[%s785 + $0x30] sm:%s775] %v798
                %v800 = vld [vmem:[%s784 + $0x38] sm:%s775]
                %801 = vst [vmem:[%s785 + $0x38] sm:%s775] %v800
                %v802 = vld [vmem:[%s784 + $0x40] sm:%s775]
                %803 = vst [vmem:[%s785 + $0x40] sm:%s775] %v802
                %v804 = vld [vmem:[%s784 + $0x48] sm:%s775]
                %805 = vst [vmem:[%s785 + $0x48] sm:%s775] %v804
                %v806 = vld [vmem:[%s784 + $0x50] sm:%s775]
                %807 = vst [vmem:[%s785 + $0x50] sm:%s775] %v806
                %v808 = vld [vmem:[%s784 + $0x58] sm:%s775]
                %809 = vst [vmem:[%s785 + $0x58] sm:%s775] %v808
                %v810 = vld [vmem:[%s784 + $0x60] sm:%s775]
                %811 = vst [vmem:[%s785 + $0x60] sm:%s775] %v810
                %v812 = vld [vmem:[%s784 + $0x68] sm:%s775]
                %813 = vst [vmem:[%s785 + $0x68] sm:%s775] %v812
                %v814 = vld [vmem:[%s784 + $0x70] sm:%s775]
                %815 = vst [vmem:[%s785 + $0x70] sm:%s775] %v814
                %v816 = vld [vmem:[%s784 + $0x78] sm:%s775]
                %817 = vst [vmem:[%s785 + $0x78] sm:%s775] %v816
                %s818 = sadd.s32 1, %s783
                %p819 = scmp.ge.s32.totalorder %s818, %s776
                %s820 = scalar_select %p819, 0, %s818
                %s821 = smul.u32 %s820, 128
                %s822 = smul.u32 %s820, 128
                %s823 = scalar_lea.vmem %s755, %s821 [#allocation2]
                %s824 = scalar_lea.vmem %s766, %s822
              $region69: #{tpu_custom_call.1} parent=63 // loop_footer
                %s780 = sadd.s32 %s778, 1
              $region70: #{tpu_custom_call.1} parent=63 // loop_footer_branch
                %777 = sbr.rel target = $region66
              $region71: #{tpu_custom_call.1} parent=63 // loop_exit
                _
              %s825 = sshrl.u32 %s762, 4
              %s826 = sand.u32 %s762, 15
              %s827 = smul.u32 %s825, 16
              %s828 = smul.u32 8, %s827
              %s829 = scalar_lea.vmem %s755, %s828 [#allocation2]
              %s830 = smul.u32 8, %s827
              %s831 = scalar_lea.vmem %s766, %s830
              // While loop
              $region72: #{tpu_custom_call.1} parent=63 // loop_pre_header
                _
              $region73: #{tpu_custom_call.1} parent=63 // loop_header
                %s833 = sphi 0, %s835
                %p834 = scmp.ge.s32.totalorder %s833, %s826
                %s838 = sphi 0, %s845
                %s839 = sphi %s829, %s848
                %s840 = sphi %s831, %s849
              $region74: #{tpu_custom_call.1} parent=63 // loop_header_branch
                %837 = sbr.rel (%p834) target = $region78
              $region75: #{tpu_custom_call.1} parent=63 // loop_body
                %v841 = vld [vmem:[%s839] sm:%s775]
                %842 = vst [vmem:[%s840] sm:%s775] %v841
                %s843 = sadd.s32 1, %s838
                %p844 = scmp.ge.s32.totalorder %s843, %s826
                %s845 = scalar_select %p844, 0, %s843
                %s846 = smul.u32 %s845, 8
                %s847 = smul.u32 %s845, 8
                %s848 = scalar_lea.vmem %s829, %s846 [#allocation2]
                %s849 = scalar_lea.vmem %s831, %s847
              $region76: #{tpu_custom_call.1} parent=63 // loop_footer
                %s835 = sadd.s32 %s833, 1
              $region77: #{tpu_custom_call.1} parent=63 // loop_footer_branch
                %832 = sbr.rel target = $region73
              $region78: #{tpu_custom_call.1} parent=63 // loop_exit
                _
            $region64: #{tpu_custom_call.1} parent=55 // pred_fallthru
              _
          $region56: #{tpu_custom_call.1} parent=51 // pred_fallthru
            _
          %928 = vnop
        $region52: #{tpu_custom_call.1} parent=47 // pred_fallthru
          _
      $region48: #{tpu_custom_call.1} parent=5 // pred_fallthru
        _
      %p929 = scmp.le.s32.totalorder 2, %s13
      // Predicated region
      $region101: #{tpu_custom_call.1} parent=5 // pred_check
        %p930 = pneg %p929
      $region102: #{tpu_custom_call.1} parent=5 // pred_check_branch
        %932 = sbr.rel (%p930) target = $region104
      $region103: #{tpu_custom_call.1} parent=5 // pred_region
        %s933 = ssub.s32 %s13, 2
        // Predicated region
        $region105: #{tpu_custom_call.1} parent=103 // pred_check
          %p934 = pneg %p194
        $region106: #{tpu_custom_call.1} parent=103 // pred_check_branch
          %936 = sbr.rel (%p934) target = $region108
        $region107: #{tpu_custom_call.1} parent=103 // pred_region
          %s937 = sand.u32 %s179, 1
          %s938 = sand.u32 %s179, 1
          %s939 = smul.addr %s938, 128
          %s940 = scalar_lea.vmem [#allocation2], %s939
        $region108: #{tpu_custom_call.1} parent=103 // pred_fallthru
          _
      $region104: #{tpu_custom_call.1} parent=5 // pred_fallthru
        _
    $region6: #{tpu_custom_call.1} parent=1 // loop_footer
      %s17 = sadd.s32 1, %s13
    $region7: #{tpu_custom_call.1} parent=1 // loop_footer_branch
      %12 = sbr.rel target = $region3
    $region8: #{tpu_custom_call.1} parent=1 // loop_exit
      _

</llo_original>
